<compile_context>
chip_gen: v5e
topology: v5e:2x2
jax: 0.10.0
libtpu: 0.0.40
codegen_flags: <defaults>
</compile_context>

<pallas_src>
import jax
import jax.numpy as jnp
from jax.experimental import pallas as pl
from jax.experimental.pallas import tpu as pltpu


# -----------------------------------------------------------------------------
# Pallas kernel: fused 2-hidden-layer MLP head + output sigmoid.
# -----------------------------------------------------------------------------
def ncf_mlp_kernel(x_ref, w1_ref, b1_ref, w2_ref, b2_ref, wout_ref, bout_ref,
                   out_ref):
    # hidden layer 1: fused (content_fc + concat + Linear + BN) -> ReLU
    h = jnp.dot(x_ref[...], w1_ref[...],
                preferred_element_type=jnp.float32) + b1_ref[...]
    h = jnp.maximum(h, 0.0)                       # ReLU (Dropout = identity, eval)

    # hidden layer 2: (Linear + BN) -> ReLU.  Matmul inputs may be bf16; the
    # elementwise math stays f32 (v5e VPU/EUP have no bf16).
    h2 = jnp.dot(h.astype(w2_ref.dtype), w2_ref[...],
                 preferred_element_type=jnp.float32) + b2_ref[...]
    h2 = jnp.maximum(h2, 0.0)

    # output head: Linear(H2 -> 1) + Sigmoid, scaled by 5.0.
    # N=1, so a lane reduction beats an MXU dot here.
    logits = jnp.sum(h2 * wout_ref[...], axis=-1, keepdims=True) + bout_ref[...]
    out_ref[...] = 5.0 / (1.0 + jnp.exp(-logits))


# -----------------------------------------------------------------------------
# One-time weight-only preprocessing: fold BN (eval mode) and content_fc.
# -----------------------------------------------------------------------------
def _fold_weights(params, matmul_dtype):
    eps = 1e-5
    E = params["user_emb"].shape[1]

    def bn_scale_shift(gamma, beta, mean, var):
        s = gamma / jnp.sqrt(var + eps)
        return s, beta - mean * s

    s1, t1 = bn_scale_shift(params["bn1_gamma"], params["bn1_beta"],
                            params["bn1_mean"], params["bn1_var"])
    s2, t2 = bn_scale_shift(params["bn2_gamma"], params["bn2_beta"],
                            params["bn2_mean"], params["bn2_var"])

    # Fold BN1 into layer-1 weights/bias.
    w1f = params["w1"] * s1[None, :]                 # (3E, H1)
    b1f = params["b1"] * s1 + t1                     # (H1,)

    # Fold content_fc into layer 1 (linear o linear == linear):
    #   c = cf @ Wc + bc   =>   c @ W1c = cf @ (Wc @ W1c) + bc @ W1c
    w1u, w1m, w1c = w1f[:E], w1f[E:2 * E], w1f[2 * E:]
    w_cat = jnp.concatenate([w1u, w1m, params["wc"] @ w1c], axis=0)  # (2E+C, H1)
    b_cat = b1f + params["bc"] @ w1c                                 # (H1,)

    # Fold BN2 into layer-2 weights/bias.
    w2f = params["w2"] * s2[None, :]
    b2f = params["b2"] * s2 + t2

    return (
        w_cat.astype(matmul_dtype),
        b_cat[None, :].astype(jnp.float32),
        w2f.astype(matmul_dtype),
        b2f[None, :].astype(jnp.float32),
        params["wout"].T.astype(jnp.float32),          # (1, H2)
        params["bout"][None, :].astype(jnp.float32),   # (1, 1)
    )


def _round_up(x, m):
    return ((x + m - 1) // m) * m


def ncf_forward(params, user_idx, movie_idx, content_features, *,
                matmul_dtype=jnp.float32, tile_batch=256):
    w_cat, b_cat, w2f, b2f, wout_t, bout = _fold_weights(params, matmul_dtype)

    # Embedding gathers (wrapper-side) and input concat.
    u = jnp.take(params["user_emb"], user_idx, axis=0)     # (B, E)
    m = jnp.take(params["movie_emb"], movie_idx, axis=0)   # (B, E)
    x = jnp.concatenate([u, m, content_features], axis=1)  # (B, 2E + C)

    B, Din = x.shape
    H1 = w_cat.shape[1]
    H2 = w2f.shape[1]

    # Batch tile: multiple of 8 sublanes, padded batch divisible by the tile.
    TB = min(int(tile_batch), _round_up(B, 8))
    Bpad = _round_up(B, TB)
    if Bpad != B:
        x = jnp.pad(x, ((0, Bpad - B), (0, 0)))
    x = x.astype(matmul_dtype)
    grid = (Bpad // TB,)

    itemsize = jnp.dtype(matmul_dtype).itemsize
    cost = pl.CostEstimate(
        flops=2 * Bpad * (Din * H1 + H1 * H2 + H2),
        transcendentals=Bpad,  # one exp per row (sigmoid)
        bytes_accessed=(Bpad * Din * itemsize
                        + (Din * H1 + H1 * H2) * itemsize
                        + (H1 + 2 * H2 + 1) * 4
                        + Bpad * 4),
    )

    const = lambda b: (0, 0)          # weights: resident in VMEM, never re-DMA'd
    out = pl.pallas_call(
        ncf_mlp_kernel,
        out_shape=jax.ShapeDtypeStruct((Bpad, 1), jnp.float32),
        grid=grid,
        in_specs=[
            pl.BlockSpec((TB, Din), lambda b: (b, 0)),   # streamed activations
            pl.BlockSpec(w_cat.shape, const),
            pl.BlockSpec(b_cat.shape, const),
            pl.BlockSpec(w2f.shape, const),
            pl.BlockSpec(b2f.shape, const),
            pl.BlockSpec(wout_t.shape, const),
            pl.BlockSpec(bout.shape, const),
        ],
        out_specs=pl.BlockSpec((TB, 1), lambda b: (b, 0)),
        compiler_params=pltpu.CompilerParams(
            dimension_semantics=("parallel",),   # megacore sharding on v7x
        ),
        cost_estimate=cost,
    )(x, w_cat, b_cat, w2f, b2f, wout_t, bout)

    return out[:B]


# -----------------------------------------------------------------------------
# deterministic parameter init (shapes follow NCF.__init__)
# -----------------------------------------------------------------------------
def init_params(key, num_users, num_movies, content_dim, embedding_dim, hidden_dims):
    ks = jax.random.split(key, 16)
    E = embedding_dim
    H1, H2 = hidden_dims

    def lin(k, fan_in, fan_out):
        bound = 1.0 / jnp.sqrt(jnp.float32(fan_in))
        kw, kb = jax.random.split(k)
        w = jax.random.uniform(kw, (fan_in, fan_out), jnp.float32, -bound, bound)
        b = jax.random.uniform(kb, (fan_out,), jnp.float32, -bound, bound)
        return w, b

    wc, bc = lin(ks[2], content_dim, E)
    w1, b1 = lin(ks[3], 3 * E, H1)
    w2, b2 = lin(ks[4], H1, H2)
    wout, bout = lin(ks[5], H2, 1)

    return {
        "user_emb": jax.random.normal(ks[0], (num_users, E), jnp.float32),
        "movie_emb": jax.random.normal(ks[1], (num_movies, E), jnp.float32),
        "wc": wc, "bc": bc,
        "w1": w1, "b1": b1,
        "bn1_gamma": jnp.ones((H1,), jnp.float32),
        "bn1_beta": jnp.zeros((H1,), jnp.float32),
        "bn1_mean": jnp.zeros((H1,), jnp.float32),
        "bn1_var": jnp.ones((H1,), jnp.float32),
        "w2": w2, "b2": b2,
        "bn2_gamma": jnp.ones((H2,), jnp.float32),
        "bn2_beta": jnp.zeros((H2,), jnp.float32),
        "bn2_mean": jnp.zeros((H2,), jnp.float32),
        "bn2_var": jnp.ones((H2,), jnp.float32),
        "wout": wout, "bout": bout,
    }


def ncf_reference(params, user_idx, movie_idx, content_features):
    """Pure-JAX reference (mirrors the PyTorch eval-mode forward)."""
    eps = 1e-5
    u = jnp.take(params["user_emb"], user_idx, axis=0)
    m = jnp.take(params["movie_emb"], movie_idx, axis=0)
    c = content_features @ params["wc"] + params["bc"]
    x = jnp.concatenate([u, m, c], axis=1)

    h = x @ params["w1"] + params["b1"]
    h = (h - params["bn1_mean"]) / jnp.sqrt(params["bn1_var"] + eps)
    h = h * params["bn1_gamma"] + params["bn1_beta"]
    h = jnp.maximum(h, 0.0)

    h = h @ params["w2"] + params["b2"]
    h = (h - params["bn2_mean"]) / jnp.sqrt(params["bn2_var"] + eps)
    h = h * params["bn2_gamma"] + params["bn2_beta"]
    h = jnp.maximum(h, 0.0)

    logits = h @ params["wout"] + params["bout"]
    return jax.nn.sigmoid(logits) * 5.0


if __name__ == "__main__":
    num_users, num_movies = 50, 60
    content_dim, embedding_dim = 16, 32
    hidden_dims = (64, 32)

    key = jax.random.PRNGKey(0)
    kp, ku, km, kc, ku2, km2, kc2 = jax.random.split(key, 7)

    params = init_params(kp, num_users, num_movies, content_dim,
                         embedding_dim, hidden_dims)

    # --- small batch (single tile) ---
    B = 8
    user_idx = jax.random.randint(ku, (B,), 0, num_users)
    movie_idx = jax.random.randint(km, (B,), 0, num_movies)
    content = jax.random.normal(kc, (B, content_dim), jnp.float32)

    out = jax.block_until_ready(ncf_forward(params, user_idx, movie_idx, content))
    ref = ncf_reference(params, user_idx, movie_idx, content)
    assert out.shape == (B, 1)
    assert jnp.allclose(out, ref, atol=1e-4, rtol=1e-4), (out, ref)

    # --- larger batch: exercises batch tiling (grid of 3 steps), padding, and
    #     the "parallel" grid axis (2 TCs on v7x) ---
    B2 = 600
    user_idx2 = jax.random.randint(ku2, (B2,), 0, num_users)
    movie_idx2 = jax.random.randint(km2, (B2,), 0, num_movies)
    content2 = jax.random.normal(kc2, (B2, content_dim), jnp.float32)

    out2 = jax.block_until_ready(
        ncf_forward(params, user_idx2, movie_idx2, content2))
    ref2 = ncf_reference(params, user_idx2, movie_idx2, content2)
    assert out2.shape == (B2, 1)
    assert jnp.allclose(out2, ref2, atol=1e-4, rtol=1e-4)

    # --- bf16 matmul-input path (v6e/v7x MXU lever); accumulation and
    #     elementwise math stay f32, so only bf16 input rounding remains ---
    out3 = jax.block_until_ready(
        ncf_forward(params, user_idx2, movie_idx2, content2,
                    matmul_dtype=jnp.bfloat16))
    assert out3.shape == (B2, 1)
    assert jnp.allclose(out3, ref2, atol=1e-1), \
        float(jnp.max(jnp.abs(out3 - ref2)))

    print("KERNEL_OK")
</pallas_src>

<mosaic_0001>
module attributes {stable_mosaic.version = 11 : i64} {
  func.func @ncf_mlp_kernel(%arg0: i32, %arg1: memref<8x80xf32, #tpu.memory_space<vmem>>, %arg2: memref<80x64xf32, #tpu.memory_space<vmem>>, %arg3: memref<1x64xf32, #tpu.memory_space<vmem>>, %arg4: memref<64x32xf32, #tpu.memory_space<vmem>>, %arg5: memref<1x32xf32, #tpu.memory_space<vmem>>, %arg6: memref<1x32xf32, #tpu.memory_space<vmem>>, %arg7: memref<1x1xf32, #tpu.memory_space<vmem>>, %arg8: memref<8x1xf32, #tpu.memory_space<vmem>>) attributes {dimension_semantics = [#tpu.dimension_semantics<parallel>], iteration_bounds = array<i64: 1>, scalar_prefetch = 0 : i64, scratch_operands = 0 : i64, tpu.core_type = #tpu.core_type<tc>, window_params = [{transform_indices = @transform_0, window_bounds = array<i64: 8, 80>}, {pipeline_mode = #tpu.pipeline_mode<synchronous>, transform_indices = @transform_1, window_bounds = array<i64: 80, 64>}, {pipeline_mode = #tpu.pipeline_mode<synchronous>, transform_indices = @transform_2, window_bounds = array<i64: 1, 64>}, {pipeline_mode = #tpu.pipeline_mode<synchronous>, transform_indices = @transform_3, window_bounds = array<i64: 64, 32>}, {pipeline_mode = #tpu.pipeline_mode<synchronous>, transform_indices = @transform_4, window_bounds = array<i64: 1, 32>}, {pipeline_mode = #tpu.pipeline_mode<synchronous>, transform_indices = @transform_5, window_bounds = array<i64: 1, 32>}, {pipeline_mode = #tpu.pipeline_mode<synchronous>, transform_indices = @transform_6, window_bounds = array<i64: 1, 1>}, {transform_indices = @transform_7, window_bounds = array<i64: 8, 1>}]} {
    %c0 = arith.constant 0 : index
    %c0_0 = arith.constant 0 : index
    %0 = vector.load %arg1[%c0, %c0_0] : memref<8x80xf32, #tpu.memory_space<vmem>>, vector<8x80xf32>
    %c0_1 = arith.constant 0 : index
    %c0_2 = arith.constant 0 : index
    %1 = vector.load %arg2[%c0_1, %c0_2] : memref<80x64xf32, #tpu.memory_space<vmem>>, vector<80x64xf32>
    %cst = arith.constant dense<0.000000e+00> : vector<8x64xf32>
    %2 = tpu.matmul %0, %1, %cst {dimension_numbers = #tpu.dot_dimension_numbers<[1], [0], [0], [1], [0, 0, 1, 1], [], []>} : vector<8x80xf32>, vector<80x64xf32>, vector<8x64xf32> -> vector<8x64xf32>
    %c0_3 = arith.constant 0 : index
    %c0_4 = arith.constant 0 : index
    %3 = vector.load %arg3[%c0_3, %c0_4] : memref<1x64xf32, #tpu.memory_space<vmem>>, vector<1x64xf32>
    %4 = vector.broadcast %3 : vector<1x64xf32> to vector<8x64xf32>
    %5 = arith.addf %2, %4 : vector<8x64xf32>
    %cst_5 = arith.constant 0.000000e+00 : f32
    %6 = vector.broadcast %cst_5 : f32 to vector<8x64xf32>
    %7 = arith.maximumf %5, %6 : vector<8x64xf32>
    %c0_6 = arith.constant 0 : index
    %c0_7 = arith.constant 0 : index
    %8 = vector.load %arg4[%c0_6, %c0_7] : memref<64x32xf32, #tpu.memory_space<vmem>>, vector<64x32xf32>
    %cst_8 = arith.constant dense<0.000000e+00> : vector<8x32xf32>
    %9 = tpu.matmul %7, %8, %cst_8 {dimension_numbers = #tpu.dot_dimension_numbers<[1], [0], [0], [1], [0, 0, 1, 1], [], []>} : vector<8x64xf32>, vector<64x32xf32>, vector<8x32xf32> -> vector<8x32xf32>
    %c0_9 = arith.constant 0 : index
    %c0_10 = arith.constant 0 : index
    %10 = vector.load %arg5[%c0_9, %c0_10] : memref<1x32xf32, #tpu.memory_space<vmem>>, vector<1x32xf32>
    %11 = vector.broadcast %10 : vector<1x32xf32> to vector<8x32xf32>
    %12 = arith.addf %9, %11 : vector<8x32xf32>
    %cst_11 = arith.constant 0.000000e+00 : f32
    %13 = vector.broadcast %cst_11 : f32 to vector<8x32xf32>
    %14 = arith.maximumf %12, %13 : vector<8x32xf32>
    %c0_12 = arith.constant 0 : index
    %c0_13 = arith.constant 0 : index
    %15 = vector.load %arg6[%c0_12, %c0_13] : memref<1x32xf32, #tpu.memory_space<vmem>>, vector<1x32xf32>
    %16 = vector.broadcast %15 : vector<1x32xf32> to vector<8x32xf32>
    %17 = arith.mulf %14, %16 : vector<8x32xf32>
    %cst_14 = arith.constant dense<0.000000e+00> : vector<8xf32>
    %18 = vector.multi_reduction <add>, %17, %cst_14 [1] : vector<8x32xf32> to vector<8xf32>
    %19 = vector.shape_cast %18 : vector<8xf32> to vector<8x1xf32>
    %c0_15 = arith.constant 0 : index
    %c0_16 = arith.constant 0 : index
    %20 = vector.load %arg7[%c0_15, %c0_16] : memref<1x1xf32, #tpu.memory_space<vmem>>, vector<1x1xf32>
    %21 = vector.broadcast %20 : vector<1x1xf32> to vector<8x1xf32>
    %22 = arith.addf %19, %21 : vector<8x1xf32>
    %cst_17 = arith.constant 0.000000e+00 : f32
    %23 = vector.broadcast %cst_17 : f32 to vector<8x1xf32>
    %24 = arith.subf %23, %22 : vector<8x1xf32>
    %25 = math.exp %24 : vector<8x1xf32>
    %cst_18 = arith.constant 1.000000e+00 : f32
    %26 = vector.broadcast %cst_18 : f32 to vector<8x1xf32>
    %27 = arith.addf %26, %25 : vector<8x1xf32>
    %cst_19 = arith.constant 5.000000e+00 : f32
    %28 = vector.broadcast %cst_19 : f32 to vector<8x1xf32>
    %29 = arith.divf %28, %27 : vector<8x1xf32>
    %c0_20 = arith.constant 0 : index
    %c0_21 = arith.constant 0 : index
    %30 = vector.load %arg8[%c0_20, %c0_21] : memref<8x1xf32, #tpu.memory_space<vmem>>, vector<8x1xf32>
    tpu.vector_store %arg8[%c0_20, %c0_21], %29 {strides = array<i32>} : memref<8x1xf32, #tpu.memory_space<vmem>>, vector<8x1xf32>,
    return
  }
  func.func @transform_0(%arg0: i32) -> (i32, i32) {
    %c0_i32 = arith.constant 0 : i32
    %c0_i32_0 = arith.constant 0 : i32
    return %arg0, %c0_i32 : i32, i32
  }
  func.func @transform_1(%arg0: i32) -> (i32, i32) {
    %c0_i32 = arith.constant 0 : i32
    %c0_i32_0 = arith.constant 0 : i32
    %c0_i32_1 = arith.constant 0 : i32
    return %c0_i32, %c0_i32_0 : i32, i32
  }
  func.func @transform_2(%arg0: i32) -> (i32, i32) {
    %c0_i32 = arith.constant 0 : i32
    %c0_i32_0 = arith.constant 0 : i32
    %c0_i32_1 = arith.constant 0 : i32
    return %c0_i32, %c0_i32_0 : i32, i32
  }
  func.func @transform_3(%arg0: i32) -> (i32, i32) {
    %c0_i32 = arith.constant 0 : i32
    %c0_i32_0 = arith.constant 0 : i32
    %c0_i32_1 = arith.constant 0 : i32
    return %c0_i32, %c0_i32_0 : i32, i32
  }
  func.func @transform_4(%arg0: i32) -> (i32, i32) {
    %c0_i32 = arith.constant 0 : i32
    %c0_i32_0 = arith.constant 0 : i32
    %c0_i32_1 = arith.constant 0 : i32
    return %c0_i32, %c0_i32_0 : i32, i32
  }
  func.func @transform_5(%arg0: i32) -> (i32, i32) {
    %c0_i32 = arith.constant 0 : i32
    %c0_i32_0 = arith.constant 0 : i32
    %c0_i32_1 = arith.constant 0 : i32
    return %c0_i32, %c0_i32_0 : i32, i32
  }
  func.func @transform_6(%arg0: i32) -> (i32, i32) {
    %c0_i32 = arith.constant 0 : i32
    %c0_i32_0 = arith.constant 0 : i32
    %c0_i32_1 = arith.constant 0 : i32
    return %c0_i32, %c0_i32_0 : i32, i32
  }
  func.func @transform_7(%arg0: i32) -> (i32, i32) {
    %c0_i32 = arith.constant 0 : i32
    %c0_i32_0 = arith.constant 0 : i32
    return %arg0, %c0_i32 : i32, i32
  }
}

</mosaic_0001>

<llo_original>
// kernel: tpu_custom_call.1
$region0: #{tpu_custom_call.1}
  #allocation0 [shape = 'u32[]', space=smem, size = 0x4, offset = 0x4, fixed_abs, tag = 'smem constant byte address 0x4 - core index']
  #allocation1 [shape = 'u32[72,128]{1,0:T(1,128)}', space=vmem, size = 0x9000, scoped, tag = 'internal scratch']
  #allocation2 [shape = 'f32[1,1]{1,0:T(1,128)S(1)}', space=vmem, size = 0x200, scoped, tag = 'scoped memory for tpu_custom_call.1']
  %s0 = inlined_call_operand.vmem [shape: f32[8,80], index: 0, kind: input, shape index: {}]
  %s1 = inlined_call_operand.vmem [shape: f32[80,64], index: 1, kind: input, shape index: {}]
  %s2 = inlined_call_operand.vmem [shape: f32[1,64], index: 2, kind: input, shape index: {}]
  %s3 = inlined_call_operand.vmem [shape: f32[64,32], index: 3, kind: input, shape index: {}]
  %s4 = inlined_call_operand.vmem [shape: f32[1,32], index: 4, kind: input, shape index: {}]
  %s5 = inlined_call_operand.vmem [shape: f32[1,32], index: 5, kind: input, shape index: {}]
  %s6 = inlined_call_operand.<no memory space> [shape: f32[1,1], index: 6, kind: input, shape index: {}]
  %s7 = inlined_call_operand.vmem [shape: f32[8,1], index: 7, kind: output, shape index: {}]
  %s8 = sld [smem:[#allocation0]]
  $region38: #{tpu_custom_call.1} parent=0
    _
  %s10 = ssub.s32 1, %s8
  %s11 = scalar_select 0, %s10, %s8
  %v12 = vstv %s6
  %13 = vst [vmem:[#allocation2] sm:$0x1] %v12
  // Predicated region
  $region2: #{tpu_custom_call.1} parent=0 // pred_check
    _
  $region3: #{tpu_custom_call.1} parent=0 // pred_check_branch
    %15 = sbr.rel (0) target = $region5
  $region4: #{tpu_custom_call.1} parent=0 // pred_region
    _
  $region5: #{tpu_custom_call.1} parent=0 // pred_fallthru
    _
  // Predicated region
  $region6: #{tpu_custom_call.1} parent=0 // pred_check
    _
  $region7: #{tpu_custom_call.1} parent=0 // pred_check_branch
    %17 = sbr.rel (0) target = $region9
  $region8: #{tpu_custom_call.1} parent=0 // pred_region
    _
  $region9: #{tpu_custom_call.1} parent=0 // pred_fallthru
    _
  // Predicated region
  $region10: #{tpu_custom_call.1} parent=0 // pred_check
    _
  $region11: #{tpu_custom_call.1} parent=0 // pred_check_branch
    %19 = sbr.rel (0) target = $region13
  $region12: #{tpu_custom_call.1} parent=0 // pred_region
    _
  $region13: #{tpu_custom_call.1} parent=0 // pred_fallthru
    _
  // Predicated region
  $region14: #{tpu_custom_call.1} parent=0 // pred_check
    _
  $region15: #{tpu_custom_call.1} parent=0 // pred_check_branch
    %21 = sbr.rel (0) target = $region17
  $region16: #{tpu_custom_call.1} parent=0 // pred_region
    _
  $region17: #{tpu_custom_call.1} parent=0 // pred_fallthru
    _
  // Predicated region
  $region18: #{tpu_custom_call.1} parent=0 // pred_check
    _
  $region19: #{tpu_custom_call.1} parent=0 // pred_check_branch
    %23 = sbr.rel (0) target = $region21
  $region20: #{tpu_custom_call.1} parent=0 // pred_region
    _
  $region21: #{tpu_custom_call.1} parent=0 // pred_fallthru
    _
  // Predicated region
  $region22: #{tpu_custom_call.1} parent=0 // pred_check
    _
  $region23: #{tpu_custom_call.1} parent=0 // pred_check_branch
    %25 = sbr.rel (0) target = $region25
  $region24: #{tpu_custom_call.1} parent=0 // pred_region
    _
  $region25: #{tpu_custom_call.1} parent=0 // pred_fallthru
    _
  // Predicated region
  $region26: #{tpu_custom_call.1} parent=0 // pred_check
    _
  $region27: #{tpu_custom_call.1} parent=0 // pred_check_branch
    %27 = sbr.rel (0) target = $region29
  $region28: #{tpu_custom_call.1} parent=0 // pred_region
    _
  $region29: #{tpu_custom_call.1} parent=0 // pred_fallthru
    _
  %v28 = vld [vmem:[%s0] sm:$0xff]
  %v29 = vld [vmem:[%s1] sm:$0xff]
  %v30 = vld [vmem:[%s1 + $0x8] sm:$0xff]
  %v31 = vld [vmem:[%s1 + $0x10] sm:$0xff]
  %v32 = vld [vmem:[%s1 + $0x18] sm:$0xff]
  %v33 = vld [vmem:[%s1 + $0x20] sm:$0xff]
  %v34 = vld [vmem:[%s1 + $0x28] sm:$0xff]
  %v35 = vld [vmem:[%s1 + $0x30] sm:$0xff]
  %v36 = vld [vmem:[%s1 + $0x38] sm:$0xff]
  %v37 = vld [vmem:[%s1 + $0x40] sm:$0xff]
  %v38 = vld [vmem:[%s1 + $0x48] sm:$0xff]
  %v39 = vld [vmem:[%s2] sm:$0x1]
  %v41 = vperm.slane %v39, 0
  %vm43 = vcmask 654336
  %v45 = vsel %vm43, %v28, 0
  %47 = vmatpush.msra.mxu0 0.0
  %48 = vmatpush.msra.mxu0 0.0
  %49 = vmatpush.msra.mxu0 0.0
  %50 = vmatpush.msra.mxu0 0.0
  %51 = vmatpush.msra.mxu0 0.0
  %52 = vmatpush.msra.mxu0 0.0
  %53 = vmatpush.msra.mxu0 %v38
  %54 = vmatpush.msra.mxu0 %v37
  %55 = vmatpush.msra.mxu0 %v36
  %56 = vmatpush.msra.mxu0 %v35
  %57 = vmatpush.msra.mxu0 %v34
  %58 = vmatpush.msra.mxu0 %v33
  %59 = vmatpush.msra.mxu0 %v32
  %60 = vmatpush.msra.mxu0 %v31
  %61 = vmatpush.msra.mxu0 %v30
  %62 = vmatpush.msra.mxu0 %v29
  %63 = vmatmul.f32.gmra.mxu0 %v45
  %v64 = vpop.f32.mrf.mxu0
  %v65 = vadd.f32 %v41, %v64
  %66 = vdwg.mxu0
  %v67 = vmax.f32 %v65, 0.0
  %v68 = vld [vmem:[%s3] sm:$0xff]
  %v69 = vld [vmem:[%s3 + $0x8] sm:$0xff]
  %v70 = vld [vmem:[%s3 + $0x10] sm:$0xff]
  %v71 = vld [vmem:[%s3 + $0x18] sm:$0xff]
  %v72 = vld [vmem:[%s3 + $0x20] sm:$0xff]
  %v73 = vld [vmem:[%s3 + $0x28] sm:$0xff]
  %v74 = vld [vmem:[%s3 + $0x30] sm:$0xff]
  %v75 = vld [vmem:[%s3 + $0x38] sm:$0xff]
  %v76 = vld [vmem:[%s4] sm:$0x1]
  %v78 = vperm.slane %v76, 0
  %vm80 = vcmask 523264
  %v82 = vsel %vm80, %v67, 0
  %84 = vmatpush.msra.mxu0 0.0
  %85 = vmatpush.msra.mxu0 0.0
  %86 = vmatpush.msra.mxu0 0.0
  %87 = vmatpush.msra.mxu0 0.0
  %88 = vmatpush.msra.mxu0 0.0
  %89 = vmatpush.msra.mxu0 0.0
  %90 = vmatpush.msra.mxu0 0.0
  %91 = vmatpush.msra.mxu0 0.0
  %92 = vmatpush.msra.mxu0 %v75
  %93 = vmatpush.msra.mxu0 %v74
  %94 = vmatpush.msra.mxu0 %v73
  %95 = vmatpush.msra.mxu0 %v72
  %96 = vmatpush.msra.mxu0 %v71
  %97 = vmatpush.msra.mxu0 %v70
  %98 = vmatpush.msra.mxu0 %v69
  %99 = vmatpush.msra.mxu0 %v68
  %100 = vmatmul.f32.gmra.mxu0 %v82
  %v101 = vpop.f32.mrf.mxu0
  %v102 = vadd.f32 %v78, %v101
  %103 = vdwg.mxu0
  %v104 = vmax.f32 %v102, 0.0
  %v105 = vld [vmem:[%s5] sm:$0x1]
  %v107 = vperm.slane %v105, 0
  %v109 = vmul.f32 %v104, %v107
  %vm110 = vcmask 261120
  %v111 = vsel %vm110, %v109, 0.0
  %112 = vadd.xlane.f32.xlu0 %v111
  %v113 = vpop.xlane.xlu0 %112
  %v114 = vld [vmem:[#allocation2] sm:$0x1]
  %v116 = vperm.slane %v114, 0
  %v118 = vadd.f32 %v113, %v116
  %v119 = vsub.f32 0.0, %v118
  %v120 = vmul.f32 %v119, 1.442695
  %v121 = vpow.pop %v120
  %v122 = vadd.f32 %v121, 1.0
  %v123 = vrcp.pop %v122
  %v124 = vmul.f32 %v122, %v123
  %v125 = vsub.f32 1.0, %v124
  %v126 = vmul.f32 %v123, %v125
  %v127 = vadd.f32 %v123, %v126
  %vm128 = vweird.f32 %v122
  %vm129 = vweird.f32 %v123
  %vm130 = vmor %vm128, %vm129
  %v131 = vsel %vm130, %v123, %v127
  %v132 = vand.u32 2147483647, %v122
  %vm133 = vcmp.eq.f32.partialorder %v132, 8.507059e+37
  %v134 = vand.u32 %v122, 2147483648
  %v135 = vor.u32 1.1754944e-38, %v134
  %v136 = vsel %vm133, %v135, %v131
  %v137 = vmul.f32 5.0, %v136
  %vm138 = vcmask 7168
  %139 = vst.msk [vmem:[%s7] sm:$0xff] %vm138, %v137
  // Predicated region
  $region30: #{tpu_custom_call.1} parent=0 // pred_check
    _
  $region31: #{tpu_custom_call.1} parent=0 // pred_check_branch
    %141 = sbr.rel (0) target = $region33
  $region32: #{tpu_custom_call.1} parent=0 // pred_region
    _
  $region33: #{tpu_custom_call.1} parent=0 // pred_fallthru
    _
  // Predicated region
  $region34: #{tpu_custom_call.1} parent=0 // pred_check
    _
  $region35: #{tpu_custom_call.1} parent=0 // pred_check_branch
    %143 = sbr.rel (0) target = $region37
  $region36: #{tpu_custom_call.1} parent=0 // pred_region
    _
  $region37: #{tpu_custom_call.1} parent=0 // pred_fallthru
    _

</llo_original>
